<compile_context>
chip_gen: v7x
topology: tpu7x:2x2x1
jax: 0.10.0
libtpu: 0.0.40
codegen_flags: <defaults>
</compile_context>

<pallas_src>
import functools

import jax
import jax.numpy as jnp
from jax.experimental import pallas as pl
from jax.experimental.pallas import tpu as pltpu


def _round_up(v, m):
    return -(-v // m) * m


def _cdiv(a, b):
    return -(-a // b)


def _subband_gru_kernel(
    x_ref,      # (tm, N)        input tile
    h_ref,      # (tm, aN)       hidden-state tile
    wx4_ref,    # (N, 4H)        [Wx_r^T | Wx_u^T | Wx_n^T |   0   ]
    wh4_ref,    # (aN, 4H)       [Wh_r^T | Wh_u^T |   0    | Wh_n^T]
    b4_ref,     # (1, 4H)        [bx_r+bh_r | bx_u+bh_u | bx_n+bh_n | 0]
    wu_ref,     # (H, aN)        linear_update_gate.weight^T
    wn_ref,     # (H, aN)        linear_new_gate.weight^T
    out_ref,    # (tm, aN)       new hidden state tile
    *,
    hidden_size,
):
    H = hidden_size
    x = x_ref[...].astype(jnp.float32)
    h = h_ref[...].astype(jnp.float32)

    # Fused gate GEMM with 4H (=128) output lanes.  K-split over x / h so the
    # reset/update (x + h) sums come from one lane-dense VPU add; the new-gate
    # h-contribution stays un-summed (zero blocks) so reset*(h@Whn) is exact.
    g = (jnp.dot(x, wx4_ref[...], preferred_element_type=jnp.float32)
         + jnp.dot(h, wh4_ref[...], preferred_element_type=jnp.float32)
         + b4_ref[...].astype(jnp.float32))

    # sigmoid(z) = 0.5*tanh(z/2) + 0.5 (tanh is a native EUP op); reset & update
    # share one 2H-wide transcendental pass.
    ru = 0.5 * jnp.tanh(0.5 * g[:, :2 * H]) + 0.5
    reset = ru[:, :H]
    update = ru[:, H:]
    new = jnp.tanh(g[:, 2 * H:3 * H] + reset * g[:, 3 * H:])

    # Project gates back to alpha*sub_band_size and blend with previous hidden state.
    u = jnp.dot(update, wu_ref[...], preferred_element_type=jnp.float32)
    n = jnp.dot(new, wn_ref[...], preferred_element_type=jnp.float32)
    # (1 - u) * n + u * h == n + u * (h - n)
    out_ref[...] = (n + u * (h - n)).astype(out_ref.dtype)


def pack_subband_gru_params(params, *, dtype=jnp.float32):
    """Pre-transpose / concatenate weights ONCE (outside the per-timestep hot path)."""
    wx = params["weight_x"]              # (2H, N)
    wh = params["weight_h"]              # (2H, aN)
    wxn = params["weight_x_new_gate"]    # (H, N)
    whn = params["weight_h_new_gate"]    # (H, aN)
    H = wxn.shape[0]
    N = wx.shape[1]
    aN = wh.shape[1]

    # Column groups: [reset | update | new_x | new_h], 4H lanes total.
    wx4 = jnp.concatenate(
        [wx.T, wxn.T, jnp.zeros((N, H), wx.dtype)], axis=1)          # (N, 4H)
    wh4 = jnp.concatenate(
        [wh.T, jnp.zeros((aN, H), wh.dtype), whn.T], axis=1)         # (aN, 4H)
    b4 = jnp.concatenate(
        [params["bias_x"] + params["bias_h"],                        # reset | update
         params["bias_x_new_gate"] + params["bias_h_new_gate"],      # new_x
         jnp.zeros((H,), wx.dtype)]).reshape(1, 4 * H)               # new_h (no bias)
    wu = params["linear_update_gate"].T                               # (H, aN)
    wn = params["linear_new_gate"].T                                  # (H, aN)
    return {"wx4": wx4.astype(dtype), "wh4": wh4.astype(dtype),
            "b4": b4.astype(jnp.float32),
            "wu": wu.astype(dtype), "wn": wn.astype(dtype)}


@functools.partial(
    jax.jit, static_argnames=("hidden_size", "alpha", "sub_band_size", "tm"))
def subband_gru_cell(inp, hidden, packed, *, hidden_size, alpha, sub_band_size,
                     tm=8192):
    """inp: [B, F, N], hidden: [B, F, alpha*N] -> new hidden [B, F, alpha*N]."""
    B, F, N = inp.shape
    aN = alpha * sub_band_size
    assert hidden.shape == (B, F, aN)
    H = hidden_size
    M = B * F

    # Large row tile (amortizes per-grid-step overhead & MXU fill/drain), then
    # rebalance so the ragged tail is small; no wrapper pad / slice — Pallas masks
    # the partial final block.
    tm = max(8, min(tm, _round_up(M, 8)))
    n_steps = _cdiv(M, tm)
    tm = _round_up(_cdiv(M, n_steps), 8)
    grid = _cdiv(M, tm)

    x2d = inp.reshape(M, N)
    h2d = hidden.reshape(M, aN)

    row_spec = lambda feat: pl.BlockSpec((tm, feat), lambda i: (i, 0))
    full_spec = lambda shape: pl.BlockSpec(shape, lambda i: (0, 0))

    # VMEM budget from actual bytes: double-buffered x/h/out tiles + resident
    # weights + in-kernel f32 intermediates, plus margin.  Stays well under the
    # 64 MiB/TC of v7x and raises the 16 MiB v5e default when needed.
    io_bytes = 2 * tm * (N + 2 * aN) * 4
    w_bytes = 2 * ((N + aN) * 4 * H + 4 * H + 2 * H * aN) * 4
    tmp_bytes = tm * (4 * H + N + 6 * aN) * 4
    vmem_limit = min(io_bytes + w_bytes + tmp_bytes + (8 << 20), 48 << 20)

    kernel = functools.partial(_subband_gru_kernel, hidden_size=H)

    out2d = pl.pallas_call(
        kernel,
        out_shape=jax.ShapeDtypeStruct((M, aN), hidden.dtype),
        grid_spec=pltpu.PrefetchScalarGridSpec(
            num_scalar_prefetch=0,
            grid=(grid,),
            in_specs=[
                row_spec(N),              # x tile
                row_spec(aN),             # h tile
                full_spec((N, 4 * H)),    # fused x-weights
                full_spec((aN, 4 * H)),   # fused h-weights
                full_spec((1, 4 * H)),    # fused biases
                full_spec((H, aN)),       # update projection
                full_spec((H, aN)),       # new projection
            ],
            out_specs=row_spec(aN),
        ),
        compiler_params=pltpu.CompilerParams(
            # Independent row tiles -> shard across TensorCores on v7x.
            dimension_semantics=("parallel",),
            vmem_limit_bytes=vmem_limit,
        ),
    )(x2d, h2d, packed["wx4"], packed["wh4"], packed["b4"],
      packed["wu"], packed["wn"])

    return out2d.reshape(B, F, aN)


def _reference(inp, hidden, params, *, hidden_size, alpha, sub_band_size):
    """Pure-JAX transcription of the PyTorch forward, for verification."""
    B, F, N = inp.shape
    aN = alpha * sub_band_size
    x = inp.reshape(B * F, N)
    h = hidden.reshape(B * F, aN)
    gates = (x @ params["weight_x"].T + params["bias_x"]
             + h @ params["weight_h"].T + params["bias_h"])
    H = hidden_size
    reset_gate = jax.nn.sigmoid(gates[:, :H])
    update_gate = jax.nn.sigmoid(gates[:, H:])
    new_gate = jnp.tanh(x @ params["weight_x_new_gate"].T + params["bias_x_new_gate"]
                        + reset_gate * (h @ params["weight_h_new_gate"].T)
                        + params["bias_h_new_gate"])
    u = update_gate @ params["linear_update_gate"].T
    n = new_gate @ params["linear_new_gate"].T
    new_h = (1.0 - u) * n + u * h
    return new_h.reshape(B, F, aN)


if __name__ == "__main__":
    # Small, module-consistent shapes.
    B, F = 2, 16
    sub_band_size = 16
    input_size = sub_band_size      # mm(input, weight_x.T) requires input_size == sub_band_size
    hidden_size = 32
    alpha = 2
    aN = alpha * sub_band_size

    key = jax.random.PRNGKey(0)
    keys = jax.random.split(key, 12)
    params = {
        "weight_x": jax.random.normal(keys[0], (2 * hidden_size, input_size), jnp.float32),
        "weight_h": jax.random.normal(keys[1], (2 * hidden_size, aN), jnp.float32),
        "bias_x": jax.random.normal(keys[2], (2 * hidden_size,), jnp.float32),
        "bias_h": jax.random.normal(keys[3], (2 * hidden_size,), jnp.float32),
        "weight_x_new_gate": jax.random.normal(keys[4], (hidden_size, input_size), jnp.float32),
        "weight_h_new_gate": jax.random.normal(keys[5], (hidden_size, aN), jnp.float32),
        "bias_x_new_gate": jax.random.normal(keys[6], (hidden_size,), jnp.float32),
        "bias_h_new_gate": jax.random.normal(keys[7], (hidden_size,), jnp.float32),
        "linear_update_gate": jax.random.normal(keys[8], (aN, hidden_size), jnp.float32),
        "linear_new_gate": jax.random.normal(keys[9], (aN, hidden_size), jnp.float32),
    }

    inp = jax.random.normal(keys[10], (B, F, sub_band_size), jnp.float32)
    hidden = jax.random.normal(keys[11], (B, F, aN), jnp.float32)

    # Pack weights once (not in the per-timestep hot path).
    packed = jax.tree_util.tree_map(
        jax.block_until_ready, pack_subband_gru_params(params))

    out = jax.block_until_ready(
        subband_gru_cell(inp, hidden, packed,
                         hidden_size=hidden_size, alpha=alpha,
                         sub_band_size=sub_band_size))

    ref = _reference(inp, hidden, params,
                     hidden_size=hidden_size, alpha=alpha, sub_band_size=sub_band_size)
    assert out.shape == (B, F, aN)
    assert jnp.allclose(out, ref, atol=1e-3, rtol=1e-3), "mismatch vs reference"

    print("KERNEL_OK")
</pallas_src>

<mosaic_0001>
module attributes {stable_mosaic.version = 11 : i64} {
  func.func @_subband_gru_kernel(%arg0: i32, %arg1: memref<32x16xf32, #tpu.memory_space<vmem>>, %arg2: memref<32x32xf32, #tpu.memory_space<vmem>>, %arg3: memref<16x128xf32, #tpu.memory_space<vmem>>, %arg4: memref<32x128xf32, #tpu.memory_space<vmem>>, %arg5: memref<1x128xf32, #tpu.memory_space<vmem>>, %arg6: memref<32x32xf32, #tpu.memory_space<vmem>>, %arg7: memref<32x32xf32, #tpu.memory_space<vmem>>, %arg8: memref<32x32xf32, #tpu.memory_space<vmem>>) attributes {dimension_semantics = [#tpu.dimension_semantics<parallel>], iteration_bounds = array<i64: 1>, scalar_prefetch = 0 : i64, scratch_operands = 0 : i64, tpu.core_type = #tpu.core_type<tc>, window_params = [{transform_indices = @transform_0, window_bounds = array<i64: 32, 16>}, {transform_indices = @transform_1, window_bounds = array<i64: 32, 32>}, {pipeline_mode = #tpu.pipeline_mode<synchronous>, transform_indices = @transform_2, window_bounds = array<i64: 16, 128>}, {pipeline_mode = #tpu.pipeline_mode<synchronous>, transform_indices = @transform_3, window_bounds = array<i64: 32, 128>}, {pipeline_mode = #tpu.pipeline_mode<synchronous>, transform_indices = @transform_4, window_bounds = array<i64: 1, 128>}, {pipeline_mode = #tpu.pipeline_mode<synchronous>, transform_indices = @transform_5, window_bounds = array<i64: 32, 32>}, {pipeline_mode = #tpu.pipeline_mode<synchronous>, transform_indices = @transform_6, window_bounds = array<i64: 32, 32>}, {transform_indices = @transform_7, window_bounds = array<i64: 32, 32>}]} {
    %c0 = arith.constant 0 : index
    %c0_0 = arith.constant 0 : index
    %0 = vector.load %arg1[%c0, %c0_0] : memref<32x16xf32, #tpu.memory_space<vmem>>, vector<32x16xf32>
    %c0_1 = arith.constant 0 : index
    %c0_2 = arith.constant 0 : index
    %1 = vector.load %arg2[%c0_1, %c0_2] : memref<32x32xf32, #tpu.memory_space<vmem>>, vector<32x32xf32>
    %c0_3 = arith.constant 0 : index
    %c0_4 = arith.constant 0 : index
    %2 = vector.load %arg3[%c0_3, %c0_4] : memref<16x128xf32, #tpu.memory_space<vmem>>, vector<16x128xf32>
    %cst = arith.constant dense<0.000000e+00> : vector<32x128xf32>
    %3 = tpu.matmul %0, %2, %cst {dimension_numbers = #tpu.dot_dimension_numbers<[1], [0], [0], [1], [0, 0, 1, 1], [], []>} : vector<32x16xf32>, vector<16x128xf32>, vector<32x128xf32> -> vector<32x128xf32>
    %c0_5 = arith.constant 0 : index
    %c0_6 = arith.constant 0 : index
    %4 = vector.load %arg4[%c0_5, %c0_6] : memref<32x128xf32, #tpu.memory_space<vmem>>, vector<32x128xf32>
    %cst_7 = arith.constant dense<0.000000e+00> : vector<32x128xf32>
    %5 = tpu.matmul %1, %4, %cst_7 {dimension_numbers = #tpu.dot_dimension_numbers<[1], [0], [0], [1], [0, 0, 1, 1], [], []>} : vector<32x32xf32>, vector<32x128xf32>, vector<32x128xf32> -> vector<32x128xf32>
    %6 = arith.addf %3, %5 : vector<32x128xf32>
    %c0_8 = arith.constant 0 : index
    %c0_9 = arith.constant 0 : index
    %7 = vector.load %arg5[%c0_8, %c0_9] : memref<1x128xf32, #tpu.memory_space<vmem>>, vector<1x128xf32>
    %8 = vector.broadcast %7 : vector<1x128xf32> to vector<32x128xf32>
    %9 = arith.addf %6, %8 : vector<32x128xf32>
    %10 = vector.extract_strided_slice %9 {offsets = [0, 0], sizes = [32, 64], strides = [1, 1]} : vector<32x128xf32> to vector<32x64xf32>
    %cst_10 = arith.constant 5.000000e-01 : f32
    %11 = vector.broadcast %cst_10 : f32 to vector<32x64xf32>
    %12 = arith.mulf %11, %10 : vector<32x64xf32>
    %13 = math.tanh %12 : vector<32x64xf32>
    %cst_11 = arith.constant 5.000000e-01 : f32
    %14 = vector.broadcast %cst_11 : f32 to vector<32x64xf32>
    %15 = arith.mulf %14, %13 : vector<32x64xf32>
    %cst_12 = arith.constant 5.000000e-01 : f32
    %16 = vector.broadcast %cst_12 : f32 to vector<32x64xf32>
    %17 = arith.addf %15, %16 : vector<32x64xf32>
    %18 = vector.extract_strided_slice %17 {offsets = [0, 0], sizes = [32, 32], strides = [1, 1]} : vector<32x64xf32> to vector<32x32xf32>
    %19 = vector.extract_strided_slice %17 {offsets = [0, 32], sizes = [32, 32], strides = [1, 1]} : vector<32x64xf32> to vector<32x32xf32>
    %20 = vector.extract_strided_slice %9 {offsets = [0, 64], sizes = [32, 32], strides = [1, 1]} : vector<32x128xf32> to vector<32x32xf32>
    %21 = vector.extract_strided_slice %9 {offsets = [0, 96], sizes = [32, 32], strides = [1, 1]} : vector<32x128xf32> to vector<32x32xf32>
    %22 = arith.mulf %18, %21 : vector<32x32xf32>
    %23 = arith.addf %20, %22 : vector<32x32xf32>
    %24 = math.tanh %23 : vector<32x32xf32>
    %c0_13 = arith.constant 0 : index
    %c0_14 = arith.constant 0 : index
    %25 = vector.load %arg6[%c0_13, %c0_14] : memref<32x32xf32, #tpu.memory_space<vmem>>, vector<32x32xf32>
    %cst_15 = arith.constant dense<0.000000e+00> : vector<32x32xf32>
    %26 = tpu.matmul %19, %25, %cst_15 {dimension_numbers = #tpu.dot_dimension_numbers<[1], [0], [0], [1], [0, 0, 1, 1], [], []>} : vector<32x32xf32>, vector<32x32xf32>, vector<32x32xf32> -> vector<32x32xf32>
    %c0_16 = arith.constant 0 : index
    %c0_17 = arith.constant 0 : index
    %27 = vector.load %arg7[%c0_16, %c0_17] : memref<32x32xf32, #tpu.memory_space<vmem>>, vector<32x32xf32>
    %cst_18 = arith.constant dense<0.000000e+00> : vector<32x32xf32>
    %28 = tpu.matmul %24, %27, %cst_18 {dimension_numbers = #tpu.dot_dimension_numbers<[1], [0], [0], [1], [0, 0, 1, 1], [], []>} : vector<32x32xf32>, vector<32x32xf32>, vector<32x32xf32> -> vector<32x32xf32>
    %29 = arith.subf %1, %28 : vector<32x32xf32>
    %30 = arith.mulf %26, %29 : vector<32x32xf32>
    %31 = arith.addf %28, %30 : vector<32x32xf32>
    %c0_19 = arith.constant 0 : index
    %c0_20 = arith.constant 0 : index
    %32 = vector.load %arg8[%c0_19, %c0_20] : memref<32x32xf32, #tpu.memory_space<vmem>>, vector<32x32xf32>
    tpu.vector_store %arg8[%c0_19, %c0_20], %31 {strides = array<i32>} : memref<32x32xf32, #tpu.memory_space<vmem>>, vector<32x32xf32>,
    return
  }
  func.func @transform_0(%arg0: i32) -> (i32, i32) {
    %c0_i32 = arith.constant 0 : i32
    %c0_i32_0 = arith.constant 0 : i32
    return %arg0, %c0_i32 : i32, i32
  }
  func.func @transform_1(%arg0: i32) -> (i32, i32) {
    %c0_i32 = arith.constant 0 : i32
    %c0_i32_0 = arith.constant 0 : i32
    return %arg0, %c0_i32 : i32, i32
  }
  func.func @transform_2(%arg0: i32) -> (i32, i32) {
    %c0_i32 = arith.constant 0 : i32
    %c0_i32_0 = arith.constant 0 : i32
    %c0_i32_1 = arith.constant 0 : i32
    return %c0_i32, %c0_i32_0 : i32, i32
  }
  func.func @transform_3(%arg0: i32) -> (i32, i32) {
    %c0_i32 = arith.constant 0 : i32
    %c0_i32_0 = arith.constant 0 : i32
    %c0_i32_1 = arith.constant 0 : i32
    return %c0_i32, %c0_i32_0 : i32, i32
  }
  func.func @transform_4(%arg0: i32) -> (i32, i32) {
    %c0_i32 = arith.constant 0 : i32
    %c0_i32_0 = arith.constant 0 : i32
    %c0_i32_1 = arith.constant 0 : i32
    return %c0_i32, %c0_i32_0 : i32, i32
  }
  func.func @transform_5(%arg0: i32) -> (i32, i32) {
    %c0_i32 = arith.constant 0 : i32
    %c0_i32_0 = arith.constant 0 : i32
    %c0_i32_1 = arith.constant 0 : i32
    return %c0_i32, %c0_i32_0 : i32, i32
  }
  func.func @transform_6(%arg0: i32) -> (i32, i32) {
    %c0_i32 = arith.constant 0 : i32
    %c0_i32_0 = arith.constant 0 : i32
    %c0_i32_1 = arith.constant 0 : i32
    return %c0_i32, %c0_i32_0 : i32, i32
  }
  func.func @transform_7(%arg0: i32) -> (i32, i32) {
    %c0_i32 = arith.constant 0 : i32
    %c0_i32_0 = arith.constant 0 : i32
    return %arg0, %c0_i32 : i32, i32
  }
}

</mosaic_0001>

<llo_original>
// kernel: subband_gru_cell.1
$region0: #{subband_gru_cell.1}
  #allocation0 [shape = 'u32[]', space=smem, size = 0x4, offset = 0x4, fixed_abs, tag = 'smem constant byte address 0x4 - core index']
  #allocation1 [shape = 'u32[144,128]{1,0:T(1,128)}', space=vmem, size = 0x12000, scoped, tag = 'internal scratch']
  %s0 = inlined_call_operand.hbm [shape: f32[32,16], index: 0, kind: input, shape index: {}]
  %s1 = inlined_call_operand.hbm [shape: f32[32,32], index: 1, kind: input, shape index: {}]
  %s2 = inlined_call_operand.vmem [shape: f32[16,128], index: 2, kind: input, shape index: {}]
  %s3 = inlined_call_operand.hbm [shape: f32[32,128], index: 3, kind: input, shape index: {}]
  %s4 = inlined_call_operand.vmem [shape: f32[1,128], index: 4, kind: input, shape index: {}]
  %s5 = inlined_call_operand.hbm [shape: f32[32,32], index: 5, kind: input, shape index: {}]
  %s6 = inlined_call_operand.hbm [shape: f32[32,32], index: 6, kind: input, shape index: {}]
  %s7 = inlined_call_operand.hbm [shape: f32[32,32], index: 7, kind: output, shape index: {}]
  %s8 = sld [smem:[#allocation0]]
  $region58: #{subband_gru_cell.1} parent=0
    _
  %s10 = ssub.s32 1, %s8
  %s11 = scalar_select 0, %s10, %s8
  $region1: #{subband_gru_cell.1} parent=0
    #allocation2 [shape = 'u8[16384]{0}', space=vmem, size = 0x4000, scoped, tag = 'input window, operand 0, single buffered']
    #allocation3 [shape = 's32[1]{0}', space=sflag, size = 0x4, scoped, tag = 'scoped memory for subband_gru_cell.1']
    #allocation4 [shape = 's32[1]{0}', space=sflag, size = 0x4, scoped, tag = 'scoped memory for subband_gru_cell.1']
    #allocation5 [shape = 'u8[16384]{0}', space=vmem, size = 0x4000, scoped, tag = 'input window, operand 1, single buffered']
    #allocation6 [shape = 's32[1]{0}', space=sflag, size = 0x4, scoped, tag = 'scoped memory for subband_gru_cell.1']
    #allocation7 [shape = 'u8[16384]{0}', space=vmem, size = 0x4000, scoped, tag = 'input window, operand 3, single buffered']
    #allocation8 [shape = 'u8[16384]{0}', space=vmem, size = 0x4000, scoped, tag = 'input window, operand 5, single buffered']
    #allocation9 [shape = 's32[1]{0}', space=sflag, size = 0x4, scoped, tag = 'scoped memory for subband_gru_cell.1']
    #allocation10 [shape = 'u8[16384]{0}', space=vmem, size = 0x4000, scoped, tag = 'input window, operand 6, single buffered']
    #allocation11 [shape = 'u8[16384]{0}', space=vmem, size = 0x4000, scoped, tag = 'output window, operand 0, single buffered']
    %12 = vsyncpa [#allocation3], 0
    %13 = vsyncpa [#allocation6], 0
    %14 = vsyncpa [#allocation9], 0
    %15 = vsyncpa [#allocation4], 0
    // Predicated region
    $region2: #{subband_gru_cell.1} parent=1 // pred_check
      _
    $region3: #{subband_gru_cell.1} parent=1 // pred_check_branch
      %17 = sbr.rel (0) target = $region5
    $region4: #{subband_gru_cell.1} parent=1 // pred_region
      %s19 = ssub.s32 512, 512
      %20 = vsyncadd [#allocation3], %s19
      %s21 = sshll.u32 [#allocation2], 4
      %s22 = int_to_ptr.vmem [resolvable:$true] %s21
      %27 = dma.hbm_to_vmem [thread:$0]  %s0, 512, %s22, [#allocation3], 128, 128, 8
    $region5: #{subband_gru_cell.1} parent=1 // pred_fallthru
      _
    // Predicated region
    $region6: #{subband_gru_cell.1} parent=1 // pred_check
      _
    $region7: #{subband_gru_cell.1} parent=1 // pred_check_branch
      %29 = sbr.rel (0) target = $region9
    $region8: #{subband_gru_cell.1} parent=1 // pred_region
      %s31 = ssub.s32 512, 512
      %32 = vsyncadd [#allocation6], %s31
      %s33 = sshll.u32 [#allocation5], 4
      %s34 = int_to_ptr.vmem [resolvable:$true] %s33
      %39 = dma.hbm_to_vmem [thread:$0]  %s1, 512, %s34, [#allocation6], 128, 128, 8
    $region9: #{subband_gru_cell.1} parent=1 // pred_fallthru
      _
    // Predicated region
    $region10: #{subband_gru_cell.1} parent=1 // pred_check
      _
    $region11: #{subband_gru_cell.1} parent=1 // pred_check_branch
      %41 = sbr.rel (0) target = $region13
    $region12: #{subband_gru_cell.1} parent=1 // pred_region
      _
    $region13: #{subband_gru_cell.1} parent=1 // pred_fallthru
      _
    // Predicated region
    $region14: #{subband_gru_cell.1} parent=1 // pred_check
      _
    $region15: #{subband_gru_cell.1} parent=1 // pred_check_branch
      %43 = sbr.rel (0) target = $region17
    $region16: #{subband_gru_cell.1} parent=1 // pred_region
      %s45 = ssub.s32 512, 512
      %46 = vsyncadd [#allocation6], %s45
      %s47 = sshll.u32 [#allocation7], 4
      %s48 = int_to_ptr.vmem [resolvable:$true] %s47
      %53 = dma.hbm_to_vmem [thread:$0]  %s3, 512, %s48, [#allocation6], 128, 128, 8
    $region17: #{subband_gru_cell.1} parent=1 // pred_fallthru
      _
    // Predicated region
    $region18: #{subband_gru_cell.1} parent=1 // pred_check
      _
    $region19: #{subband_gru_cell.1} parent=1 // pred_check_branch
      %55 = sbr.rel (0) target = $region21
    $region20: #{subband_gru_cell.1} parent=1 // pred_region
      _
    $region21: #{subband_gru_cell.1} parent=1 // pred_fallthru
      _
    // Predicated region
    $region22: #{subband_gru_cell.1} parent=1 // pred_check
      _
    $region23: #{subband_gru_cell.1} parent=1 // pred_check_branch
      %57 = sbr.rel (0) target = $region25
    $region24: #{subband_gru_cell.1} parent=1 // pred_region
      %s59 = ssub.s32 512, 512
      %60 = vsyncadd [#allocation9], %s59
      %s61 = sshll.u32 [#allocation8], 4
      %s62 = int_to_ptr.vmem [resolvable:$true] %s61
      %67 = dma.hbm_to_vmem [thread:$0]  %s5, 512, %s62, [#allocation9], 128, 128, 8
    $region25: #{subband_gru_cell.1} parent=1 // pred_fallthru
      _
    // Predicated region
    $region26: #{subband_gru_cell.1} parent=1 // pred_check
      _
    $region27: #{subband_gru_cell.1} parent=1 // pred_check_branch
      %69 = sbr.rel (0) target = $region29
    $region28: #{subband_gru_cell.1} parent=1 // pred_region
      %s71 = ssub.s32 512, 512
      %72 = vsyncadd [#allocation9], %s71
      %s73 = sshll.u32 [#allocation10], 4
      %s74 = int_to_ptr.vmem [resolvable:$true] %s73
      %79 = dma.hbm_to_vmem [thread:$0]  %s6, 512, %s74, [#allocation9], 128, 128, 8
    $region29: #{subband_gru_cell.1} parent=1 // pred_fallthru
      _
    // Predicated region
    $region30: #{subband_gru_cell.1} parent=1 // pred_check
      _
    $region31: #{subband_gru_cell.1} parent=1 // pred_check_branch
      %81 = sbr.rel (0) target = $region33
    $region32: #{subband_gru_cell.1} parent=1 // pred_region
      %82 = dma.done [#allocation3], 512
    $region33: #{subband_gru_cell.1} parent=1 // pred_fallthru
      _
    // Predicated region
    $region34: #{subband_gru_cell.1} parent=1 // pred_check
      _
    $region35: #{subband_gru_cell.1} parent=1 // pred_check_branch
      %84 = sbr.rel (0) target = $region37
    $region36: #{subband_gru_cell.1} parent=1 // pred_region
      %85 = dma.done [#allocation6], 512
    $region37: #{subband_gru_cell.1} parent=1 // pred_fallthru
      _
    // Predicated region
    $region38: #{subband_gru_cell.1} parent=1 // pred_check
      _
    $region39: #{subband_gru_cell.1} parent=1 // pred_check_branch
      %87 = sbr.rel (0) target = $region41
    $region40: #{subband_gru_cell.1} parent=1 // pred_region
      %88 = dma.done [#allocation6], 512
    $region41: #{subband_gru_cell.1} parent=1 // pred_fallthru
      _
    // Predicated region
    $region42: #{subband_gru_cell.1} parent=1 // pred_check
      _
    $region43: #{subband_gru_cell.1} parent=1 // pred_check_branch
      %90 = sbr.rel (0) target = $region45
    $region44: #{subband_gru_cell.1} parent=1 // pred_region
      %91 = dma.done [#allocation9], 512
    $region45: #{subband_gru_cell.1} parent=1 // pred_fallthru
      _
    // Predicated region
    $region46: #{subband_gru_cell.1} parent=1 // pred_check
      _
    $region47: #{subband_gru_cell.1} parent=1 // pred_check_branch
      %93 = sbr.rel (0) target = $region49
    $region48: #{subband_gru_cell.1} parent=1 // pred_region
      %94 = dma.done [#allocation9], 512
    $region49: #{subband_gru_cell.1} parent=1 // pred_fallthru
      _
    %v95 = vld [vmem:[#allocation2] sm:$0xff]
    %v96 = vld [vmem:[#allocation2 + $0x8] sm:$0xff]
    %v97 = vld [vmem:[#allocation2 + $0x10] sm:$0xff]
    %v98 = vld [vmem:[#allocation2 + $0x18] sm:$0xff]
    %v99 = vld [vmem:[#allocation5] sm:$0xff]
    %v100 = vld [vmem:[#allocation5 + $0x8] sm:$0xff]
    %v101 = vld [vmem:[#allocation5 + $0x10] sm:$0xff]
    %v102 = vld [vmem:[#allocation5 + $0x18] sm:$0xff]
    %v103 = vld [vmem:[%s2] sm:$0xff]
    %v104 = vld [vmem:[%s2 + $0x8] sm:$0xff]
    %v105 = vld [vmem:[#allocation7] sm:$0xff]
    %v106 = vld [vmem:[#allocation7 + $0x8] sm:$0xff]
    %v107 = vld [vmem:[#allocation7 + $0x10] sm:$0xff]
    %v108 = vld [vmem:[#allocation7 + $0x18] sm:$0xff]
    %vm109 = vcmask 261120
    %v111 = vsel %vm109, %v99, 0
    %v114 = vsel %vm109, %v100, 0
    %v117 = vsel %vm109, %v101, 0
    %v120 = vsel %vm109, %v102, 0
    %122 = vmatprep.subr.mxu0 0.0
    %123 = vmatpush1.msra.mxu0 %v105
    %124 = vmatprep.subr.mxu0 0.0
    %125 = vmatpush1.msra.mxu0 %v106
    %126 = vmatprep.subr.mxu0 0.0
    %127 = vmatpush1.msra.mxu0 %v107
    %128 = vmatprep.subr.mxu0 0.0
    %129 = vmatpush1.msra.mxu0 %v108
    %130 = vmatprep.subr.mxu0 0.0
    %131 = vmatpush1.msra.mxu0 0.0
    %132 = vmatprep.subr.mxu0 0.0
    %133 = vmatpush1.msra.mxu0 0.0
    %134 = vmatprep.subr.mxu0 0.0
    %135 = vmatpush1.msra.mxu0 0.0
    %136 = vmatprep.subr.mxu0 0.0
    %137 = vmatpush1.msra.mxu0 0.0
    %138 = vmatprep.subr.mxu0 0.0
    %139 = vmatpush1.msra.mxu0 0.0
    %140 = vmatprep.subr.mxu0 0.0
    %141 = vmatpush1.msra.mxu0 0.0
    %142 = vmatprep.subr.mxu0 0.0
    %143 = vmatpush1.msra.mxu0 0.0
    %144 = vmatprep.subr.mxu0 0.0
    %145 = vmatpush1.msra.mxu0 0.0
    %146 = vmatprep.subr.mxu0 0.0
    %147 = vmatpush1.msra.mxu0 0.0
    %148 = vmatprep.subr.mxu0 0.0
    %149 = vmatpush1.msra.mxu0 0.0
    %150 = vmatprep.subr.mxu0 0.0
    %151 = vmatpush1.msra.mxu0 0.0
    %152 = vmatprep.subr.mxu0 0.0
    %153 = vmatpush1.msra.mxu0 0.0
    %154 = vmatprep.subr.mxu0 0.0
    %155 = vmatpush1.msra.mxu0 0.0
    %156 = vmatprep.subr.mxu0 0.0
    %157 = vmatpush1.msra.mxu0 0.0
    %158 = vmatprep.subr.mxu0 0.0
    %159 = vmatpush1.msra.mxu0 0.0
    %160 = vmatprep.subr.mxu0 0.0
    %161 = vmatpush1.msra.mxu0 0.0
    %162 = vmatprep.subr.mxu0 0.0
    %163 = vmatpush1.msra.mxu0 0.0
    %164 = vmatprep.subr.mxu0 0.0
    %165 = vmatpush1.msra.mxu0 0.0
    %166 = vmatprep.subr.mxu0 0.0
    %167 = vmatpush1.msra.mxu0 0.0
    %168 = vmatprep.subr.mxu0 0.0
    %169 = vmatpush1.msra.mxu0 0.0
    %170 = vmatprep.subr.mxu0 0.0
    %171 = vmatpush1.msra.mxu0 0.0
    %172 = vmatprep.subr.mxu0 0.0
    %173 = vmatpush1.msra.mxu0 0.0
    %174 = vmatprep.subr.mxu0 0.0
    %175 = vmatpush1.msra.mxu0 0.0
    %176 = vmatprep.subr.mxu0 0.0
    %177 = vmatpush1.msra.mxu0 0.0
    %178 = vmatprep.subr.mxu0 0.0
    %179 = vmatpush1.msra.mxu0 0.0
    %180 = vmatprep.subr.mxu0 0.0
    %181 = vmatpush1.msra.mxu0 0.0
    %182 = vmatprep.subr.mxu0 0.0
    %183 = vmatpush1.msra.mxu0 0.0
    %184 = vmatprep.subr.mxu0 0.0
    %185 = vmatpush1.msra.mxu0 0.0
    %186 = vmatprep.mubr.f32.mxu0 0.0
    %187 = vmatmul.mubr.f32.gmra.mrb[0].mxu0 %v111
    %v188 = vpop.f32.mrb[0].mxu0
    %v189 = vadd.f32 0.0, %v188
    %v190 = vpop.f32.mrb[0].mxu0
    %191 = vmatprep.mubr.f32.mxu0 0.0
    %192 = vmatmul.mubr.f32.gmra.mrb[0].mxu0 %v114
    %v193 = vpop.f32.mrb[0].mxu0
    %v194 = vadd.f32 0.0, %v193
    %v195 = vpop.f32.mrb[0].mxu0
    %196 = vmatprep.mubr.f32.mxu0 0.0
    %197 = vmatmul.mubr.f32.gmra.mrb[0].mxu0 %v117
    %v198 = vpop.f32.mrb[0].mxu0
    %v199 = vadd.f32 0.0, %v198
    %v200 = vpop.f32.mrb[0].mxu0
    %201 = vmatprep.mubr.f32.mxu0 0.0
    %202 = vmatmul.mubr.f32.gmra.mrb[0].mxu0 %v120
    %v203 = vpop.f32.mrb[0].mxu0
    %v204 = vadd.f32 0.0, %v203
    %v205 = vpop.f32.mrb[0].mxu0
    %206 = vdwg.mxu0
    %vm207 = vcmask 130048
    %v209 = vsel %vm207, %v95, 0
    %v212 = vsel %vm207, %v96, 0
    %v215 = vsel %vm207, %v97, 0
    %v218 = vsel %vm207, %v98, 0
    %220 = vmatprep.subr.mxu0 0.0
    %221 = vmatpush1.msra.mxu0 %v103
    %222 = vmatprep.subr.mxu0 0.0
    %223 = vmatpush1.msra.mxu0 %v104
    %224 = vmatprep.subr.mxu0 0.0
    %225 = vmatpush1.msra.mxu0 0.0
    %226 = vmatprep.subr.mxu0 0.0
    %227 = vmatpush1.msra.mxu0 0.0
    %228 = vmatprep.subr.mxu0 0.0
    %229 = vmatpush1.msra.mxu0 0.0
    %230 = vmatprep.subr.mxu0 0.0
    %231 = vmatpush1.msra.mxu0 0.0
    %232 = vmatprep.subr.mxu0 0.0
    %233 = vmatpush1.msra.mxu0 0.0
    %234 = vmatprep.subr.mxu0 0.0
    %235 = vmatpush1.msra.mxu0 0.0
    %236 = vmatprep.subr.mxu0 0.0
    %237 = vmatpush1.msra.mxu0 0.0
    %238 = vmatprep.subr.mxu0 0.0
    %239 = vmatpush1.msra.mxu0 0.0
    %240 = vmatprep.subr.mxu0 0.0
    %241 = vmatpush1.msra.mxu0 0.0
    %242 = vmatprep.subr.mxu0 0.0
    %243 = vmatpush1.msra.mxu0 0.0
    %244 = vmatprep.subr.mxu0 0.0
    %245 = vmatpush1.msra.mxu0 0.0
    %246 = vmatprep.subr.mxu0 0.0
    %247 = vmatpush1.msra.mxu0 0.0
    %248 = vmatprep.subr.mxu0 0.0
    %249 = vmatpush1.msra.mxu0 0.0
    %250 = vmatprep.subr.mxu0 0.0
    %251 = vmatpush1.msra.mxu0 0.0
    %252 = vmatprep.subr.mxu0 0.0
    %253 = vmatpush1.msra.mxu0 0.0
    %254 = vmatprep.subr.mxu0 0.0
    %255 = vmatpush1.msra.mxu0 0.0
    %256 = vmatprep.subr.mxu0 0.0
    %257 = vmatpush1.msra.mxu0 0.0
    %258 = vmatprep.subr.mxu0 0.0
    %259 = vmatpush1.msra.mxu0 0.0
    %260 = vmatprep.subr.mxu0 0.0
    %261 = vmatpush1.msra.mxu0 0.0
    %262 = vmatprep.subr.mxu0 0.0
    %263 = vmatpush1.msra.mxu0 0.0
    %264 = vmatprep.subr.mxu0 0.0
    %265 = vmatpush1.msra.mxu0 0.0
    %266 = vmatprep.subr.mxu0 0.0
    %267 = vmatpush1.msra.mxu0 0.0
    %268 = vmatprep.subr.mxu0 0.0
    %269 = vmatpush1.msra.mxu0 0.0
    %270 = vmatprep.subr.mxu0 0.0
    %271 = vmatpush1.msra.mxu0 0.0
    %272 = vmatprep.subr.mxu0 0.0
    %273 = vmatpush1.msra.mxu0 0.0
    %274 = vmatprep.subr.mxu0 0.0
    %275 = vmatpush1.msra.mxu0 0.0
    %276 = vmatprep.subr.mxu0 0.0
    %277 = vmatpush1.msra.mxu0 0.0
    %278 = vmatprep.subr.mxu0 0.0
    %279 = vmatpush1.msra.mxu0 0.0
    %280 = vmatprep.subr.mxu0 0.0
    %281 = vmatpush1.msra.mxu0 0.0
    %282 = vmatprep.subr.mxu0 0.0
    %283 = vmatpush1.msra.mxu0 0.0
    %284 = vmatprep.mubr.f32.mxu0 0.0
    %285 = vmatmul.mubr.f32.gmra.mrb[0].mxu0 %v209
    %v286 = vpop.f32.mrb[0].mxu0
    %v287 = vadd.f32 %v189, %v286
    %v288 = vpop.f32.mrb[0].mxu0
    %289 = vmatprep.mubr.f32.mxu0 0.0
    %290 = vmatmul.mubr.f32.gmra.mrb[0].mxu0 %v212
    %v291 = vpop.f32.mrb[0].mxu0
    %v292 = vadd.f32 %v194, %v291
    %v293 = vpop.f32.mrb[0].mxu0
    %294 = vmatprep.mubr.f32.mxu0 0.0
    %295 = vmatmul.mubr.f32.gmra.mrb[0].mxu0 %v215
    %v296 = vpop.f32.mrb[0].mxu0
    %v297 = vadd.f32 %v199, %v296
    %v298 = vpop.f32.mrb[0].mxu0
    %299 = vmatprep.mubr.f32.mxu0 0.0
    %300 = vmatmul.mubr.f32.gmra.mrb[0].mxu0 %v218
    %v301 = vpop.f32.mrb[0].mxu0
    %v302 = vadd.f32 %v204, %v301
    %v303 = vpop.f32.mrb[0].mxu0
    %304 = vdwg.mxu0
    %v305 = vld [vmem:[%s4] sm:$0x1]
    %v307 = vlaneseq
    %v308 = vshrl.u32 %v307, 7
    %v309 = vsub.s32 0, %v308
    %v310 = vrot.slane %v305, %v309
    %v312 = vadd.f32 %v287, %v310
    %v313 = vadd.f32 %v292, %v310
    %v314 = vadd.f32 %v297, %v310
    %v315 = vadd.f32 %v302, %v310
    %v316 = vmul.f32 %v312, 0.5
    %v317 = vmul.f32 %v313, 0.5
    %v318 = vmul.f32 %v314, 0.5
    %v319 = vmul.f32 %v315, 0.5
    %v320 = vtanh.pop %v316
    %v321 = vtanh.pop %v317
    %v322 = vtanh.pop %v318
    %v323 = vtanh.pop %v319
    %v324 = vmul.f32 %v320, 0.5
    %v325 = vmul.f32 %v321, 0.5
    %v326 = vmul.f32 %v322, 0.5
    %v327 = vmul.f32 %v323, 0.5
    %v328 = vadd.f32 %v324, 0.5
    %v329 = vadd.f32 %v325, 0.5
    %v330 = vadd.f32 %v326, 0.5
    %v331 = vadd.f32 %v327, 0.5
    %336 = vrot.lane.b32.xlu0 %v312, 32
    %v337 = vpop.permute.xlu0 %336
    %338 = vrot.lane.b32.xlu0 %v313, 32
    %v339 = vpop.permute.xlu0 %338
    %340 = vrot.lane.b32.xlu0 %v314, 32
    %v341 = vpop.permute.xlu0 %340
    %342 = vrot.lane.b32.xlu0 %v315, 32
    %v343 = vpop.permute.xlu0 %342
    %v348 = vmul.f32 %v328, %v337
    %v349 = vmul.f32 %v329, %v339
    %v350 = vmul.f32 %v330, %v341
    %v351 = vmul.f32 %v331, %v343
    %356 = vrot.lane.b32.xlu0 %v348, 64
    %v357 = vpop.permute.xlu0 %356
    %358 = vrot.lane.b32.xlu0 %v349, 64
    %v359 = vpop.permute.xlu0 %358
    %360 = vrot.lane.b32.xlu0 %v350, 64
    %v361 = vpop.permute.xlu0 %360
    %362 = vrot.lane.b32.xlu0 %v351, 64
    %v363 = vpop.permute.xlu0 %362
    %v368 = vadd.f32 %v312, %v357
    %v369 = vadd.f32 %v313, %v359
    %v370 = vadd.f32 %v314, %v361
    %v371 = vadd.f32 %v315, %v363
    %v372 = vtanh.pop %v368
    %v373 = vtanh.pop %v369
    %v374 = vtanh.pop %v370
    %v375 = vtanh.pop %v371
    %v376 = vld [vmem:[#allocation8] sm:$0xff]
    %v377 = vld [vmem:[#allocation8 + $0x8] sm:$0xff]
    %v378 = vld [vmem:[#allocation8 + $0x10] sm:$0xff]
    %v379 = vld [vmem:[#allocation8 + $0x18] sm:$0xff]
    %384 = vrot.lane.b32.xlu0 %v328, 96
    %v385 = vpop.permute.xlu0 %384
    %386 = vrot.lane.b32.xlu0 %v329, 96
    %v387 = vpop.permute.xlu0 %386
    %388 = vrot.lane.b32.xlu0 %v330, 96
    %v389 = vpop.permute.xlu0 %388
    %390 = vrot.lane.b32.xlu0 %v331, 96
    %v391 = vpop.permute.xlu0 %390
    %v392 = vsel %vm109, %v385, 0
    %v394 = vsel %vm109, %v387, 0
    %v396 = vsel %vm109, %v389, 0
    %v398 = vsel %vm109, %v391, 0
    %400 = vmatprep.subr.mxu0 0.0
    %401 = vmatpush1.msra.mxu0 %v376
    %402 = vmatprep.subr.mxu0 0.0
    %403 = vmatpush1.msra.mxu0 %v377
    %404 = vmatprep.subr.mxu0 0.0
    %405 = vmatpush1.msra.mxu0 %v378
    %406 = vmatprep.subr.mxu0 0.0
    %407 = vmatpush1.msra.mxu0 %v379
    %408 = vmatprep.subr.mxu0 0.0
    %409 = vmatpush1.msra.mxu0 0.0
    %410 = vmatprep.subr.mxu0 0.0
    %411 = vmatpush1.msra.mxu0 0.0
    %412 = vmatprep.subr.mxu0 0.0
    %413 = vmatpush1.msra.mxu0 0.0
    %414 = vmatprep.subr.mxu0 0.0
    %415 = vmatpush1.msra.mxu0 0.0
    %416 = vmatprep.subr.mxu0 0.0
    %417 = vmatpush1.msra.mxu0 0.0
    %418 = vmatprep.subr.mxu0 0.0
    %419 = vmatpush1.msra.mxu0 0.0
    %420 = vmatprep.subr.mxu0 0.0
    %421 = vmatpush1.msra.mxu0 0.0
    %422 = vmatprep.subr.mxu0 0.0
    %423 = vmatpush1.msra.mxu0 0.0
    %424 = vmatprep.subr.mxu0 0.0
    %425 = vmatpush1.msra.mxu0 0.0
    %426 = vmatprep.subr.mxu0 0.0
    %427 = vmatpush1.msra.mxu0 0.0
    %428 = vmatprep.subr.mxu0 0.0
    %429 = vmatpush1.msra.mxu0 0.0
    %430 = vmatprep.subr.mxu0 0.0
    %431 = vmatpush1.msra.mxu0 0.0
    %432 = vmatprep.subr.mxu0 0.0
    %433 = vmatpush1.msra.mxu0 0.0
    %434 = vmatprep.subr.mxu0 0.0
    %435 = vmatpush1.msra.mxu0 0.0
    %436 = vmatprep.subr.mxu0 0.0
    %437 = vmatpush1.msra.mxu0 0.0
    %438 = vmatprep.subr.mxu0 0.0
    %439 = vmatpush1.msra.mxu0 0.0
    %440 = vmatprep.subr.mxu0 0.0
    %441 = vmatpush1.msra.mxu0 0.0
    %442 = vmatprep.subr.mxu0 0.0
    %443 = vmatpush1.msra.mxu0 0.0
    %444 = vmatprep.subr.mxu0 0.0
    %445 = vmatpush1.msra.mxu0 0.0
    %446 = vmatprep.subr.mxu0 0.0
    %447 = vmatpush1.msra.mxu0 0.0
    %448 = vmatprep.subr.mxu0 0.0
    %449 = vmatpush1.msra.mxu0 0.0
    %450 = vmatprep.subr.mxu0 0.0
    %451 = vmatpush1.msra.mxu0 0.0
    %452 = vmatprep.subr.mxu0 0.0
    %453 = vmatpush1.msra.mxu0 0.0
    %454 = vmatprep.subr.mxu0 0.0
    %455 = vmatpush1.msra.mxu0 0.0
    %456 = vmatprep.subr.mxu0 0.0
    %457 = vmatpush1.msra.mxu0 0.0
    %458 = vmatprep.subr.mxu0 0.0
    %459 = vmatpush1.msra.mxu0 0.0
    %460 = vmatprep.subr.mxu0 0.0
    %461 = vmatpush1.msra.mxu0 0.0
    %462 = vmatprep.subr.mxu0 0.0
    %463 = vmatpush1.msra.mxu0 0.0
    %464 = vmatprep.mubr.f32.mxu0 0.0
    %465 = vmatmul.mubr.f32.gmra.mrb[0].mxu0 %v392
    %v466 = vpop.f32.mrb[0].mxu0
    %v467 = vadd.f32 0.0, %v466
    %v468 = vpop.f32.mrb[0].mxu0
    %469 = vmatprep.mubr.f32.mxu0 0.0
    %470 = vmatmul.mubr.f32.gmra.mrb[0].mxu0 %v394
    %v471 = vpop.f32.mrb[0].mxu0
    %v472 = vadd.f32 0.0, %v471
    %v473 = vpop.f32.mrb[0].mxu0
    %474 = vmatprep.mubr.f32.mxu0 0.0
    %475 = vmatmul.mubr.f32.gmra.mrb[0].mxu0 %v396
    %v476 = vpop.f32.mrb[0].mxu0
    %v477 = vadd.f32 0.0, %v476
    %v478 = vpop.f32.mrb[0].mxu0
    %479 = vmatprep.mubr.f32.mxu0 0.0
    %480 = vmatmul.mubr.f32.gmra.mrb[0].mxu0 %v398
    %v481 = vpop.f32.mrb[0].mxu0
    %v482 = vadd.f32 0.0, %v481
    %v483 = vpop.f32.mrb[0].mxu0
    %484 = vdwg.mxu0
    %v485 = vld [vmem:[#allocation10] sm:$0xff]
    %v486 = vld [vmem:[#allocation10 + $0x8] sm:$0xff]
    %v487 = vld [vmem:[#allocation10 + $0x10] sm:$0xff]
    %v488 = vld [vmem:[#allocation10 + $0x18] sm:$0xff]
    %493 = vrot.lane.b32.xlu0 %v372, 64
    %v494 = vpop.permute.xlu0 %493
    %495 = vrot.lane.b32.xlu0 %v373, 64
    %v496 = vpop.permute.xlu0 %495
    %497 = vrot.lane.b32.xlu0 %v374, 64
    %v498 = vpop.permute.xlu0 %497
    %499 = vrot.lane.b32.xlu0 %v375, 64
    %v500 = vpop.permute.xlu0 %499
    %v501 = vsel %vm109, %v494, 0
    %v503 = vsel %vm109, %v496, 0
    %v505 = vsel %vm109, %v498, 0
    %v507 = vsel %vm109, %v500, 0
    %509 = vmatprep.subr.mxu0 0.0
    %510 = vmatpush1.msra.mxu0 %v485
    %511 = vmatprep.subr.mxu0 0.0
    %512 = vmatpush1.msra.mxu0 %v486
    %513 = vmatprep.subr.mxu0 0.0
    %514 = vmatpush1.msra.mxu0 %v487
    %515 = vmatprep.subr.mxu0 0.0
    %516 = vmatpush1.msra.mxu0 %v488
    %517 = vmatprep.subr.mxu0 0.0
    %518 = vmatpush1.msra.mxu0 0.0
    %519 = vmatprep.subr.mxu0 0.0
    %520 = vmatpush1.msra.mxu0 0.0
    %521 = vmatprep.subr.mxu0 0.0
    %522 = vmatpush1.msra.mxu0 0.0
    %523 = vmatprep.subr.mxu0 0.0
    %524 = vmatpush1.msra.mxu0 0.0
    %525 = vmatprep.subr.mxu0 0.0
    %526 = vmatpush1.msra.mxu0 0.0
    %527 = vmatprep.subr.mxu0 0.0
    %528 = vmatpush1.msra.mxu0 0.0
    %529 = vmatprep.subr.mxu0 0.0
    %530 = vmatpush1.msra.mxu0 0.0
    %531 = vmatprep.subr.mxu0 0.0
    %532 = vmatpush1.msra.mxu0 0.0
    %533 = vmatprep.subr.mxu0 0.0
    %534 = vmatpush1.msra.mxu0 0.0
    %535 = vmatprep.subr.mxu0 0.0
    %536 = vmatpush1.msra.mxu0 0.0
    %537 = vmatprep.subr.mxu0 0.0
    %538 = vmatpush1.msra.mxu0 0.0
    %539 = vmatprep.subr.mxu0 0.0
    %540 = vmatpush1.msra.mxu0 0.0
    %541 = vmatprep.subr.mxu0 0.0
    %542 = vmatpush1.msra.mxu0 0.0
    %543 = vmatprep.subr.mxu0 0.0
    %544 = vmatpush1.msra.mxu0 0.0
    %545 = vmatprep.subr.mxu0 0.0
    %546 = vmatpush1.msra.mxu0 0.0
    %547 = vmatprep.subr.mxu0 0.0
    %548 = vmatpush1.msra.mxu0 0.0
    %549 = vmatprep.subr.mxu0 0.0
    %550 = vmatpush1.msra.mxu0 0.0
    %551 = vmatprep.subr.mxu0 0.0
    %552 = vmatpush1.msra.mxu0 0.0
    %553 = vmatprep.subr.mxu0 0.0
    %554 = vmatpush1.msra.mxu0 0.0
    %555 = vmatprep.subr.mxu0 0.0
    %556 = vmatpush1.msra.mxu0 0.0
    %557 = vmatprep.subr.mxu0 0.0
    %558 = vmatpush1.msra.mxu0 0.0
    %559 = vmatprep.subr.mxu0 0.0
    %560 = vmatpush1.msra.mxu0 0.0
    %561 = vmatprep.subr.mxu0 0.0
    %562 = vmatpush1.msra.mxu0 0.0
    %563 = vmatprep.subr.mxu0 0.0
    %564 = vmatpush1.msra.mxu0 0.0
    %565 = vmatprep.subr.mxu0 0.0
    %566 = vmatpush1.msra.mxu0 0.0
    %567 = vmatprep.subr.mxu0 0.0
    %568 = vmatpush1.msra.mxu0 0.0
    %569 = vmatprep.subr.mxu0 0.0
    %570 = vmatpush1.msra.mxu0 0.0
    %571 = vmatprep.subr.mxu0 0.0
    %572 = vmatpush1.msra.mxu0 0.0
    %573 = vmatprep.mubr.f32.mxu0 0.0
    %574 = vmatmul.mubr.f32.gmra.mrb[0].mxu0 %v501
    %v575 = vpop.f32.mrb[0].mxu0
    %v576 = vadd.f32 0.0, %v575
    %v577 = vpop.f32.mrb[0].mxu0
    %578 = vmatprep.mubr.f32.mxu0 0.0
    %579 = vmatmul.mubr.f32.gmra.mrb[0].mxu0 %v503
    %v580 = vpop.f32.mrb[0].mxu0
    %v581 = vadd.f32 0.0, %v580
    %v582 = vpop.f32.mrb[0].mxu0
    %583 = vmatprep.mubr.f32.mxu0 0.0
    %584 = vmatmul.mubr.f32.gmra.mrb[0].mxu0 %v505
    %v585 = vpop.f32.mrb[0].mxu0
    %v586 = vadd.f32 0.0, %v585
    %v587 = vpop.f32.mrb[0].mxu0
    %588 = vmatprep.mubr.f32.mxu0 0.0
    %589 = vmatmul.mubr.f32.gmra.mrb[0].mxu0 %v507
    %v590 = vpop.f32.mrb[0].mxu0
    %v591 = vadd.f32 0.0, %v590
    %v592 = vpop.f32.mrb[0].mxu0
    %593 = vdwg.mxu0
    %v594 = vsub.f32 %v99, %v576
    %v595 = vsub.f32 %v100, %v581
    %v596 = vsub.f32 %v101, %v586
    %v597 = vsub.f32 %v102, %v591
    %v598 = vmul.f32 %v467, %v594
    %v599 = vmul.f32 %v472, %v595
    %v600 = vmul.f32 %v477, %v596
    %v601 = vmul.f32 %v482, %v597
    %v602 = vadd.f32 %v576, %v598
    %v603 = vadd.f32 %v581, %v599
    %v604 = vadd.f32 %v586, %v600
    %v605 = vadd.f32 %v591, %v601
    %606 = vst.msk [vmem:[#allocation11] sm:$0xff] %vm109, %v602
    %607 = vst.msk [vmem:[#allocation11 + $0x8] sm:$0xff] %vm109, %v603
    %608 = vst.msk [vmem:[#allocation11 + $0x10] sm:$0xff] %vm109, %v604
    %609 = vst.msk [vmem:[#allocation11 + $0x18] sm:$0xff] %vm109, %v605
    // Predicated region
    $region50: #{subband_gru_cell.1} parent=1 // pred_check
      _
    $region51: #{subband_gru_cell.1} parent=1 // pred_check_branch
      %611 = sbr.rel (0) target = $region53
    $region52: #{subband_gru_cell.1} parent=1 // pred_region
      %s613 = ssub.s32 512, 512
      %614 = vsyncadd [#allocation4], %s613
      %s615 = sshll.u32 [#allocation11], 4
      %s616 = int_to_ptr.vmem [resolvable:$true] %s615
      %621 = dma.vmem_to_hbm [thread:$0]  %s616, 512, %s7, [#allocation4], 128, 128, 8
    $region53: #{subband_gru_cell.1} parent=1 // pred_fallthru
      _
    // Predicated region
    $region54: #{subband_gru_cell.1} parent=1 // pred_check
      _
    $region55: #{subband_gru_cell.1} parent=1 // pred_check_branch
      %623 = sbr.rel (0) target = $region57
    $region56: #{subband_gru_cell.1} parent=1 // pred_region
      %624 = dma.done [#allocation4], 512
    $region57: #{subband_gru_cell.1} parent=1 // pred_fallthru
      _
    %625 = vsyncpa [#allocation3], 1
    %626 = vsyncpa [#allocation6], 1
    %627 = vsyncpa [#allocation9], 1
    %628 = vsyncpa [#allocation4], 1

</llo_original>
